<compile_context>
chip_gen: v7x
topology: tpu7x:2x2x1
jax: 0.10.0
libtpu: 0.0.40
codegen_flags: <defaults>
</compile_context>

<pallas_src>
import functools

import jax
import jax.numpy as jnp
from jax.experimental import pallas as pl
from jax.experimental.pallas import tpu as pltpu


def _shifting_kernel(x_ref, o_ref, pad_ref, *, shift, height, width):
    """One (channel_tile, H, W) slab -> identity + 4 shifted views.

    x_ref:   (TC, H, W)            input channel tile
    o_ref:   (5, TC, H, W)         outputs: [id, lu, ru, lb, rb]
    pad_ref: (TC, H+2s, W+2s)      VMEM scratch (zero-padded copy of the tile)
    """
    s, H, W = shift, height, width
    x = x_ref[...]

    # Zero-padded copy of the tile.  Re-zeroed every grid step so correctness
    # does not depend on which TensorCore ran the "first" step (megacore-safe).
    pad_ref[...] = jnp.zeros_like(pad_ref)
    pad_ref[:, s:s + H, s:s + W] = x

    # Five single block stores per tile; all shifted views are static slices.
    o_ref[0] = x                                              # identity
    o_ref[1] = pad_ref[:, 0:H, 0:W]                           # lu: x[i-s, j-s]
    o_ref[2] = pad_ref[:, 0:H, 2 * s:2 * s + W]               # ru: x[i-s, j+s]
    o_ref[3] = pad_ref[:, 2 * s:2 * s + H, 0:W]               # lb: x[i+s, j-s]
    o_ref[4] = pad_ref[:, 2 * s:2 * s + H, 2 * s:2 * s + W]   # rb: x[i+s, j+s]


def _pick_channel_tile(C, H, W, shift, itemsize, budget_bytes=8 << 20):
    """Largest divisor of C whose per-step VMEM footprint fits the budget
    (input + 5x output blocks double-buffered by the pipeline, plus scratch).
    Conservative budget keeps us well under the scoped-VMEM default on
    v5e (16 MiB) / v6e (32 MiB) / v7x (32 of 64 MiB)."""
    best = 1
    for tc in range(1, C + 1):
        if C % tc:
            continue
        tile = tc * H * W * itemsize
        pad = tc * (H + 2 * shift) * (W + 2 * shift) * itemsize
        total = 2 * (tile + 5 * tile) + pad
        if total <= budget_bytes:
            best = tc
    return best


def shifting(x, shift, *, channel_tile=None):
    """Pallas TPU equivalent of Shifting(shift).forward(x) for NCHW input."""
    assert shift >= 1, "shift must be >= 1 (torch slicing `:-2*shift` requires it)"
    B, C, H, W = x.shape
    s = int(shift)

    if channel_tile is None:
        channel_tile = _pick_channel_tile(C, H, W, s, x.dtype.itemsize)
    assert C % channel_tile == 0, "channel_tile must divide C"
    TC = channel_tile

    kernel = functools.partial(_shifting_kernel, shift=s, height=H, width=W)

    out5 = pl.pallas_call(
        kernel,
        out_shape=jax.ShapeDtypeStruct((B, 5, C, H, W), x.dtype),
        grid_spec=pltpu.PrefetchScalarGridSpec(
            num_scalar_prefetch=0,
            grid=(B, C // TC),
            in_specs=[
                pl.BlockSpec((None, TC, H, W), lambda b, c: (b, c, 0, 0)),
            ],
            out_specs=pl.BlockSpec(
                (None, 5, TC, H, W), lambda b, c: (b, 0, c, 0, 0)),
            scratch_shapes=[
                pltpu.VMEM((TC, H + 2 * s, W + 2 * s), x.dtype),
            ],
        ),
        compiler_params=pltpu.CompilerParams(
            dimension_semantics=("parallel", "parallel"),
        ),
    )(x)

    # torch.cat([x, lu, ru, lb, rb], dim=1) is exactly the contiguous
    # (B, 5, C, H, W) slab flattened over its 2nd/3rd axes — free reshape.
    return out5.reshape(B, 5 * C, H, W)


def reference(x, shift):
    """Pure-JAX reference matching the torch module exactly."""
    s = shift
    xp = jnp.pad(x, ((0, 0), (0, 0), (s, s), (s, s)))
    x_lu = xp[:, :, :-2 * s, :-2 * s]
    x_ru = xp[:, :, :-2 * s, 2 * s:]
    x_lb = xp[:, :, 2 * s:, :-2 * s]
    x_rb = xp[:, :, 2 * s:, 2 * s:]
    return jnp.concatenate([x, x_lu, x_ru, x_lb, x_rb], axis=1)


if __name__ == "__main__":
    B, C, H, W = 2, 4, 16, 16
    key = jax.random.PRNGKey(0)
    x = jax.random.normal(key, (B, C, H, W), dtype=jnp.float32)

    for s in (1, 2):
        out = jax.block_until_ready(shifting(x, s))
        ref = reference(x, s)
        assert out.shape == (B, 5 * C, H, W)
        assert out.dtype == x.dtype
        assert jnp.array_equal(out, ref), f"mismatch vs reference (shift={s})"

    print("KERNEL_OK")
</pallas_src>

<mosaic_0001>
module attributes {stable_mosaic.version = 11 : i64} {
  func.func @_shifting_kernel(%arg0: i32, %arg1: i32, %arg2: memref<1x4x16x16xf32, #tpu.memory_space<vmem>>, %arg3: memref<1x5x4x16x16xf32, #tpu.memory_space<vmem>>, %arg4: memref<4x18x18xf32, #tpu.memory_space<vmem>>) attributes {dimension_semantics = [#tpu.dimension_semantics<parallel>, #tpu.dimension_semantics<parallel>], iteration_bounds = array<i64: 2, 1>, scalar_prefetch = 0 : i64, scratch_operands = 1 : i64, tpu.core_type = #tpu.core_type<tc>, window_params = [{transform_indices = @transform_0, window_bounds = array<i64: 1, 4, 16, 16>}, {transform_indices = @transform_1, window_bounds = array<i64: 1, 5, 4, 16, 16>}]} {
    %c0 = arith.constant 0 : index
    %c0_0 = arith.constant 0 : index
    %c0_1 = arith.constant 0 : index
    %c0_2 = arith.constant 0 : index
    %0 = vector.load %arg2[%c0, %c0_0, %c0_1, %c0_2] : memref<1x4x16x16xf32, #tpu.memory_space<vmem>>, vector<1x4x16x16xf32>
    %1 = vector.shape_cast %0 : vector<1x4x16x16xf32> to vector<4x16x16xf32>
    %cst = arith.constant 0.000000e+00 : f32
    %2 = vector.broadcast %cst : f32 to vector<4x18x18xf32>
    %c0_3 = arith.constant 0 : index
    %c0_4 = arith.constant 0 : index
    %c0_5 = arith.constant 0 : index
    %3 = vector.load %arg4[%c0_3, %c0_4, %c0_5] : memref<4x18x18xf32, #tpu.memory_space<vmem>>, vector<4x18x18xf32>
    tpu.vector_store %arg4[%c0_3, %c0_4, %c0_5], %2 {strides = array<i32>} : memref<4x18x18xf32, #tpu.memory_space<vmem>>, vector<4x18x18xf32>,
    %c0_6 = arith.constant 0 : index
    %c1 = arith.constant 1 : index
    %c1_7 = arith.constant 1 : index
    %4 = vector.load %arg4[%c0_6, %c1, %c1_7] : memref<4x18x18xf32, #tpu.memory_space<vmem>>, vector<4x16x16xf32>
    tpu.vector_store %arg4[%c0_6, %c1, %c1_7], %1 {strides = array<i32>} : memref<4x18x18xf32, #tpu.memory_space<vmem>>, vector<4x16x16xf32>,
    %c0_8 = arith.constant 0 : index
    %c0_9 = arith.constant 0 : index
    %c0_10 = arith.constant 0 : index
    %c0_11 = arith.constant 0 : index
    %c0_12 = arith.constant 0 : index
    %5 = vector.load %arg3[%c0_8, %c0_9, %c0_10, %c0_11, %c0_12] : memref<1x5x4x16x16xf32, #tpu.memory_space<vmem>>, vector<1x1x4x16x16xf32>
    %6 = vector.shape_cast %5 : vector<1x1x4x16x16xf32> to vector<4x16x16xf32>
    %7 = vector.shape_cast %1 : vector<4x16x16xf32> to vector<1x1x4x16x16xf32>
    tpu.vector_store %arg3[%c0_8, %c0_9, %c0_10, %c0_11, %c0_12], %7 {strides = array<i32>} : memref<1x5x4x16x16xf32, #tpu.memory_space<vmem>>, vector<1x1x4x16x16xf32>,
    %c0_13 = arith.constant 0 : index
    %c0_14 = arith.constant 0 : index
    %c0_15 = arith.constant 0 : index
    %8 = vector.load %arg4[%c0_13, %c0_14, %c0_15] : memref<4x18x18xf32, #tpu.memory_space<vmem>>, vector<4x16x16xf32>
    %c0_16 = arith.constant 0 : index
    %c1_17 = arith.constant 1 : index
    %c0_18 = arith.constant 0 : index
    %c0_19 = arith.constant 0 : index
    %c0_20 = arith.constant 0 : index
    %9 = vector.load %arg3[%c0_16, %c1_17, %c0_18, %c0_19, %c0_20] : memref<1x5x4x16x16xf32, #tpu.memory_space<vmem>>, vector<1x1x4x16x16xf32>
    %10 = vector.shape_cast %9 : vector<1x1x4x16x16xf32> to vector<4x16x16xf32>
    %11 = vector.shape_cast %8 : vector<4x16x16xf32> to vector<1x1x4x16x16xf32>
    tpu.vector_store %arg3[%c0_16, %c1_17, %c0_18, %c0_19, %c0_20], %11 {strides = array<i32>} : memref<1x5x4x16x16xf32, #tpu.memory_space<vmem>>, vector<1x1x4x16x16xf32>,
    %c0_21 = arith.constant 0 : index
    %c0_22 = arith.constant 0 : index
    %c2 = arith.constant 2 : index
    %12 = vector.load %arg4[%c0_21, %c0_22, %c2] : memref<4x18x18xf32, #tpu.memory_space<vmem>>, vector<4x16x16xf32>
    %c0_23 = arith.constant 0 : index
    %c2_24 = arith.constant 2 : index
    %c0_25 = arith.constant 0 : index
    %c0_26 = arith.constant 0 : index
    %c0_27 = arith.constant 0 : index
    %13 = vector.load %arg3[%c0_23, %c2_24, %c0_25, %c0_26, %c0_27] : memref<1x5x4x16x16xf32, #tpu.memory_space<vmem>>, vector<1x1x4x16x16xf32>
    %14 = vector.shape_cast %13 : vector<1x1x4x16x16xf32> to vector<4x16x16xf32>
    %15 = vector.shape_cast %12 : vector<4x16x16xf32> to vector<1x1x4x16x16xf32>
    tpu.vector_store %arg3[%c0_23, %c2_24, %c0_25, %c0_26, %c0_27], %15 {strides = array<i32>} : memref<1x5x4x16x16xf32, #tpu.memory_space<vmem>>, vector<1x1x4x16x16xf32>,
    %c0_28 = arith.constant 0 : index
    %c2_29 = arith.constant 2 : index
    %c0_30 = arith.constant 0 : index
    %16 = vector.load %arg4[%c0_28, %c2_29, %c0_30] : memref<4x18x18xf32, #tpu.memory_space<vmem>>, vector<4x16x16xf32>
    %c0_31 = arith.constant 0 : index
    %c3 = arith.constant 3 : index
    %c0_32 = arith.constant 0 : index
    %c0_33 = arith.constant 0 : index
    %c0_34 = arith.constant 0 : index
    %17 = vector.load %arg3[%c0_31, %c3, %c0_32, %c0_33, %c0_34] : memref<1x5x4x16x16xf32, #tpu.memory_space<vmem>>, vector<1x1x4x16x16xf32>
    %18 = vector.shape_cast %17 : vector<1x1x4x16x16xf32> to vector<4x16x16xf32>
    %19 = vector.shape_cast %16 : vector<4x16x16xf32> to vector<1x1x4x16x16xf32>
    tpu.vector_store %arg3[%c0_31, %c3, %c0_32, %c0_33, %c0_34], %19 {strides = array<i32>} : memref<1x5x4x16x16xf32, #tpu.memory_space<vmem>>, vector<1x1x4x16x16xf32>,
    %c0_35 = arith.constant 0 : index
    %c2_36 = arith.constant 2 : index
    %c2_37 = arith.constant 2 : index
    %20 = vector.load %arg4[%c0_35, %c2_36, %c2_37] : memref<4x18x18xf32, #tpu.memory_space<vmem>>, vector<4x16x16xf32>
    %c0_38 = arith.constant 0 : index
    %c4 = arith.constant 4 : index
    %c0_39 = arith.constant 0 : index
    %c0_40 = arith.constant 0 : index
    %c0_41 = arith.constant 0 : index
    %21 = vector.load %arg3[%c0_38, %c4, %c0_39, %c0_40, %c0_41] : memref<1x5x4x16x16xf32, #tpu.memory_space<vmem>>, vector<1x1x4x16x16xf32>
    %22 = vector.shape_cast %21 : vector<1x1x4x16x16xf32> to vector<4x16x16xf32>
    %23 = vector.shape_cast %20 : vector<4x16x16xf32> to vector<1x1x4x16x16xf32>
    tpu.vector_store %arg3[%c0_38, %c4, %c0_39, %c0_40, %c0_41], %23 {strides = array<i32>} : memref<1x5x4x16x16xf32, #tpu.memory_space<vmem>>, vector<1x1x4x16x16xf32>,
    return
  }
  func.func @transform_0(%arg0: i32, %arg1: i32) -> (i32, i32, i32, i32) {
    %c0_i32 = arith.constant 0 : i32
    %c0_i32_0 = arith.constant 0 : i32
    %c0_i32_1 = arith.constant 0 : i32
    return %arg0, %arg1, %c0_i32, %c0_i32_0 : i32, i32, i32, i32
  }
  func.func @transform_1(%arg0: i32, %arg1: i32) -> (i32, i32, i32, i32, i32) {
    %c0_i32 = arith.constant 0 : i32
    %c0_i32_0 = arith.constant 0 : i32
    %c0_i32_1 = arith.constant 0 : i32
    %c0_i32_2 = arith.constant 0 : i32
    return %arg0, %c0_i32, %arg1, %c0_i32_0, %c0_i32_1 : i32, i32, i32, i32, i32
  }
}

</mosaic_0001>

<llo_original>
// kernel: tpu_custom_call.1
$region0: #{tpu_custom_call.1}
  #allocation0 [shape = 'u32[]', space=smem, size = 0x4, offset = 0x4, fixed_abs, tag = 'smem constant byte address 0x4 - core index']
  #allocation1 [shape = 'u32[144,128]{1,0:T(1,128)}', space=vmem, size = 0x12000, scoped, tag = 'internal scratch']
  #allocation2 [shape = 'f32[4,18,18]{2,1,0:T(8,128)}', space=vmem, size = 0xc000, scoped, tag = 'scratch operand']
  %s0 = inlined_call_operand.hbm [shape: f32[2,4,16,16], index: 0, kind: input, shape index: {}]
  %s1 = inlined_call_operand.hbm [shape: f32[2,5,4,16,16], index: 1, kind: output, shape index: {}]
  %s2 = sld [smem:[#allocation0]]
  $region41: #{tpu_custom_call.1} parent=0
    _
  %s4 = ssub.s32 1, %s2
  %s5 = scalar_select 0, %s4, %s2
  $region1: #{tpu_custom_call.1} parent=0
    #allocation3 [shape = 'u8[65536]{0}', space=vmem, size = 0x10000, scoped, tag = 'input window, operand 0']
    #allocation4 [shape = 's32[2]{0}', space=sflag, size = 0x8, scoped, tag = 'scoped memory for tpu_custom_call.1']
    #allocation5 [shape = 's32[2]{0}', space=sflag, size = 0x8, scoped, tag = 'scoped memory for tpu_custom_call.1']
    #allocation6 [shape = 'u8[327680]{0}', space=vmem, size = 0x50000, scoped, tag = 'output window, operand 0']
    %6 = vsyncpa [#allocation4], 0
    %s7 = scalar_lea.sflag [#allocation4], 1
    %8 = vsyncpa %s7, 0
    %9 = vsyncpa [#allocation5], 0
    %s10 = scalar_lea.sflag [#allocation5], 1
    %11 = vsyncpa %s10, 0
    loop: start=0, step=1, limit=4
    $region2: #{tpu_custom_call.1} parent=1 // loop_pre_header
      _
    $region3: #{tpu_custom_call.1} parent=1 // loop_header
      %s13 = sphi 0, %s17
      %p14 = scmp.ge.s32.totalorder %s13, 4
      %s20 = sphi 0, %s32
      %s21 = sphi 0, %s28
      %s22 = sphi 0, %s20
      %s23 = sphi 0, %s21
      %s24 = sphi 0, %s22
      %s25 = sphi 0, %s23
      %s37 = sphi 0, %s39
      %s40 = sphi 0, %s37
      %s41 = sphi 0, %s40
      %s57 = sphi 0, %s41
      %s65 = sphi 0, %s67
      %s68 = sphi 0, %s65
      %s69 = sphi 0, %s68
      %s85 = sphi 0, %s69
    $region4: #{tpu_custom_call.1} parent=1 // loop_header_branch
      %16 = sbr.rel (%p14) target = $region8
    $region5: #{tpu_custom_call.1} parent=1 // loop_body
      %s18 = ssub.s32 %s13, 1
      %s19 = ssub.s32 %s13, 2
      %s26 = sadd.s32 1, %s21
      %p27 = scmp.ge.s32.totalorder %s26, 1
      %s28 = scalar_select %p27, 0, %s26
      %s29 = sadd.s32 1, %s20
      %s30 = scalar_select %p27, %s29, %s20
      %p31 = scmp.ge.s32.totalorder %s30, 2
      %s32 = scalar_select %p31, 0, %s30
      %s33 = ssub.s32 %s20, %s32
      %s34 = ssub.s32 %s21, %s28
      %s35 = sor.u32 %s33, %s34
      %p36 = scmp.eq.s32.totalorder %s35, 0
      %s38 = sadd.s32 %s37, 1
      %s39 = scalar_select %p36, %s37, %s38
      %p42 = pneg %p36
      %p43 = scmp.eq.s32.totalorder %s13, 1
      %p44 = por %p42, %p43
      %p45 = scmp.ne.s32.totalorder %s37, %s40
      %p46 = scmp.eq.s32.totalorder %s13, 0
      %p47 = por %p45, %p46
      %p48 = scmp.ne.s32.totalorder %s37, %s40
      %p49 = scmp.eq.s32.totalorder %s18, 1
      %p50 = por %p48, %p49
      %p51 = scmp.ne.s32.totalorder %s40, %s41
      %p52 = scmp.eq.s32.totalorder %s18, 0
      %p53 = por %p51, %p52
      %p54 = scmp.ne.s32.totalorder %s40, %s41
      %p55 = scmp.eq.s32.totalorder %s19, 1
      %p56 = por %p54, %p55
      %p58 = scmp.ne.s32.totalorder %s41, %s57
      %p59 = scmp.eq.s32.totalorder %s19, 0
      %p60 = por %p58, %p59
      %s61 = ssub.s32 %s20, %s32
      %s62 = ssub.s32 %s21, %s28
      %s63 = sor.u32 %s61, %s62
      %p64 = scmp.eq.s32.totalorder %s63, 0
      %s66 = sadd.s32 %s65, 1
      %s67 = scalar_select %p64, %s65, %s66
      %p70 = pneg %p64
      %p71 = scmp.eq.s32.totalorder %s13, 1
      %p72 = por %p70, %p71
      %p73 = scmp.ne.s32.totalorder %s65, %s68
      %p74 = scmp.eq.s32.totalorder %s13, 0
      %p75 = por %p73, %p74
      %p76 = scmp.ne.s32.totalorder %s65, %s68
      %p77 = scmp.eq.s32.totalorder %s18, 1
      %p78 = por %p76, %p77
      %p79 = scmp.ne.s32.totalorder %s68, %s69
      %p80 = scmp.eq.s32.totalorder %s18, 0
      %p81 = por %p79, %p80
      %p82 = scmp.ne.s32.totalorder %s68, %s69
      %p83 = scmp.eq.s32.totalorder %s19, 1
      %p84 = por %p82, %p83
      %p86 = scmp.ne.s32.totalorder %s69, %s85
      %p87 = scmp.eq.s32.totalorder %s19, 0
      %p88 = por %p86, %p87
      %p89 = scmp.le.s32.totalorder 1, %s13
      %p90 = scmp.lt.s32.totalorder %s13, 3
      %p91 = pnand %p89, %p90
      %p92 = pneg %p91
      // Predicated region
      $region9: #{tpu_custom_call.1} parent=5 // pred_check
        _
      $region10: #{tpu_custom_call.1} parent=5 // pred_check_branch
        %94 = sbr.rel (%p91) target = $region12
      $region11: #{tpu_custom_call.1} parent=5 // pred_region
        %s95 = ssub.s32 %s13, 1
      $region12: #{tpu_custom_call.1} parent=5 // pred_fallthru
        _
      %p96 = scmp.lt.s32.totalorder %s13, 2
      // Predicated region
      $region13: #{tpu_custom_call.1} parent=5 // pred_check
        %p97 = pneg %p96
      $region14: #{tpu_custom_call.1} parent=5 // pred_check_branch
        %99 = sbr.rel (%p97) target = $region16
      $region15: #{tpu_custom_call.1} parent=5 // pred_region
        // Predicated region
        $region17: #{tpu_custom_call.1} parent=15 // pred_check
          %p100 = pneg %p47
        $region18: #{tpu_custom_call.1} parent=15 // pred_check_branch
          %102 = sbr.rel (%p100) target = $region20
        $region19: #{tpu_custom_call.1} parent=15 // pred_region
          %s103 = sand.u32 %s37, 1
          %s104 = scalar_lea.sflag [#allocation4], %s103
          %s105 = sand.u32 %s37, 1
          %s106 = smul.addr %s105, 64
          %s107 = scalar_lea.vmem [#allocation3], %s106
          %s108 = smul.u32 4, %s21
          %s110 = ssub.s32 1024, 1024
          %111 = vsyncadd %s104, %s110
          %s112 = smul.addr %s108, 2
          %s113 = smul.addr %s20, 8
          %s114 = sadd.s32 %s112, %s113
          %s115 = smul.addr %s114, 128
          %s116 = scalar_lea.hbm %s0, %s115
          %s117 = sshll.u32 %s107, 4
          %s118 = int_to_ptr.vmem [resolvable:$true] %s117
          %123 = dma.hbm_to_vmem [thread:$0]  %s116, 1024, %s118, %s104, 128, 128, 8
        $region20: #{tpu_custom_call.1} parent=15 // pred_fallthru
          _
      $region16: #{tpu_custom_call.1} parent=5 // pred_fallthru
        _
      %p124 = scmp.le.s32.totalorder 1, %s13
      %p125 = scmp.lt.s32.totalorder %s13, 3
      %p126 = pnand %p124, %p125
      %p127 = pneg %p126
      // Predicated region
      $region21: #{tpu_custom_call.1} parent=5 // pred_check
        _
      $region22: #{tpu_custom_call.1} parent=5 // pred_check_branch
        %129 = sbr.rel (%p126) target = $region24
      $region23: #{tpu_custom_call.1} parent=5 // pred_region
        %s130 = ssub.s32 %s13, 1
        %s131 = sand.u32 %s40, 1
        %s132 = scalar_lea.sflag [#allocation4], %s131
        %s133 = sand.u32 %s40, 1
        %s134 = smul.addr %s133, 64
        %s135 = scalar_lea.vmem [#allocation3], %s134
        // Predicated region
        $region25: #{tpu_custom_call.1} parent=23 // pred_check
          %p136 = pneg %p53
        $region26: #{tpu_custom_call.1} parent=23 // pred_check_branch
          %138 = sbr.rel (%p136) target = $region28
        $region27: #{tpu_custom_call.1} parent=23 // pred_region
          %139 = dma.done %s132, 1024
        $region28: #{tpu_custom_call.1} parent=23 // pred_fallthru
          _
        %s140 = sand.u32 %s40, 1
        %s141 = scalar_lea.sflag [#allocation4], %s140
        %s142 = sand.u32 %s40, 1
        %s143 = smul.addr %s142, 64
        %s144 = scalar_lea.vmem [#allocation3], %s143
        %p145 = pneg %p53
        %p146 = pneg %p50
        %p147 = pneg %p81
        %p148 = pneg %p78
        %s149 = sand.u32 %s68, 1
        %s150 = scalar_lea.sflag [#allocation5], %s149
        %s151 = sand.u32 %s68, 1
        %s152 = smul.addr %s151, 320
        %s153 = scalar_lea.vmem [#allocation6], %s152
        %s154 = smul.u32 4, %s23
        %s155 = smul.u32 4, %s23
        %v156 = vld [vmem:[%s135] sm:$0xff]
        %v157 = vld [vmem:[%s135 + $0x8] sm:$0xff]
        %v158 = vld [vmem:[%s135 + $0x10] sm:$0xff]
        %v159 = vld [vmem:[%s135 + $0x18] sm:$0xff]
        %v160 = vld [vmem:[%s135 + $0x20] sm:$0xff]
        %v161 = vld [vmem:[%s135 + $0x28] sm:$0xff]
        %v162 = vld [vmem:[%s135 + $0x30] sm:$0xff]
        %v163 = vld [vmem:[%s135 + $0x38] sm:$0xff]
        %vm164 = vcmask 146432
        %165 = vst.msk [vmem:[#allocation2] sm:$0xff] %vm164, 0.0
        %166 = vst.msk [vmem:[#allocation2 + $0x8] sm:$0xff] %vm164, 0.0
        %vm167 = vcmask 140288
        %168 = vst.msk [vmem:[#allocation2 + $0x10] sm:$0x3] %vm167, 0.0
        %169 = vst.msk [vmem:[#allocation2 + $0x18] sm:$0xff] %vm164, 0.0
        %170 = vst.msk [vmem:[#allocation2 + $0x20] sm:$0xff] %vm164, 0.0
        %171 = vst.msk [vmem:[#allocation2 + $0x28] sm:$0x3] %vm167, 0.0
        %172 = vst.msk [vmem:[#allocation2 + $0x30] sm:$0xff] %vm164, 0.0
        %173 = vst.msk [vmem:[#allocation2 + $0x38] sm:$0xff] %vm164, 0.0
        %174 = vst.msk [vmem:[#allocation2 + $0x40] sm:$0x3] %vm167, 0.0
        %175 = vst.msk [vmem:[#allocation2 + $0x48] sm:$0xff] %vm164, 0.0
        %176 = vst.msk [vmem:[#allocation2 + $0x50] sm:$0xff] %vm164, 0.0
        %177 = vst.msk [vmem:[#allocation2 + $0x58] sm:$0x3] %vm167, 0.0
        %186 = vrot.lane.b32.xlu0 %v156, 1
        %v187 = vpop.permute.xlu0 %186
        %188 = vrot.lane.b32.xlu0 %v157, 1
        %v189 = vpop.permute.xlu0 %188
        %190 = vrot.lane.b32.xlu0 %v158, 1
        %v191 = vpop.permute.xlu0 %190
        %192 = vrot.lane.b32.xlu0 %v159, 1
        %v193 = vpop.permute.xlu0 %192
        %194 = vrot.lane.b32.xlu0 %v160, 1
        %v195 = vpop.permute.xlu0 %194
        %196 = vrot.lane.b32.xlu0 %v161, 1
        %v197 = vpop.permute.xlu0 %196
        %198 = vrot.lane.b32.xlu0 %v162, 1
        %v199 = vpop.permute.xlu0 %198
        %200 = vrot.lane.b32.xlu0 %v163, 1
        %v201 = vpop.permute.xlu0 %200
        %vm210 = vcmask 138248
        %211 = vst.msk [vmem:[#allocation2 + $0x1] sm:$0xff] %vm210, %v187
        %212 = vst.msk [vmem:[#allocation2 + $0x9] sm:$0xff] %vm210, %v189
        %213 = vst.msk [vmem:[#allocation2 + $0x19] sm:$0xff] %vm210, %v191
        %214 = vst.msk [vmem:[#allocation2 + $0x21] sm:$0xff] %vm210, %v193
        %215 = vst.msk [vmem:[#allocation2 + $0x31] sm:$0xff] %vm210, %v195
        %216 = vst.msk [vmem:[#allocation2 + $0x39] sm:$0xff] %vm210, %v197
        %217 = vst.msk [vmem:[#allocation2 + $0x49] sm:$0xff] %vm210, %v199
        %218 = vst.msk [vmem:[#allocation2 + $0x51] sm:$0xff] %vm210, %v201
        %vm219 = vcmask 130048
        %220 = vst.msk [vmem:[%s153] sm:$0xff] %vm219, %v156
        %221 = vst.msk [vmem:[%s153 + $0x8] sm:$0xff] %vm219, %v157
        %222 = vst.msk [vmem:[%s153 + $0x10] sm:$0xff] %vm219, %v158
        %223 = vst.msk [vmem:[%s153 + $0x18] sm:$0xff] %vm219, %v159
        %224 = vst.msk [vmem:[%s153 + $0x20] sm:$0xff] %vm219, %v160
        %225 = vst.msk [vmem:[%s153 + $0x28] sm:$0xff] %vm219, %v161
        %226 = vst.msk [vmem:[%s153 + $0x30] sm:$0xff] %vm219, %v162
        %227 = vst.msk [vmem:[%s153 + $0x38] sm:$0xff] %vm219, %v163
        %v228 = vld [vmem:[#allocation2] sm:$0xff]
        %v229 = vld [vmem:[#allocation2 + $0x8] sm:$0xff]
        %v230 = vld [vmem:[#allocation2 + $0x18] sm:$0xff]
        %v231 = vld [vmem:[#allocation2 + $0x20] sm:$0xff]
        %v232 = vld [vmem:[#allocation2 + $0x30] sm:$0xff]
        %v233 = vld [vmem:[#allocation2 + $0x38] sm:$0xff]
        %v234 = vld [vmem:[#allocation2 + $0x48] sm:$0xff]
        %v235 = vld [vmem:[#allocation2 + $0x50] sm:$0xff]
        %s236 = scalar_lea.vmem %s153, 64 [#allocation6]
        %237 = vst.msk [vmem:[%s236] sm:$0xff] %vm219, %v228
        %238 = vst.msk [vmem:[%s236 + $0x8] sm:$0xff] %vm219, %v229
        %239 = vst.msk [vmem:[%s236 + $0x10] sm:$0xff] %vm219, %v230
        %240 = vst.msk [vmem:[%s236 + $0x18] sm:$0xff] %vm219, %v231
        %241 = vst.msk [vmem:[%s236 + $0x20] sm:$0xff] %vm219, %v232
        %242 = vst.msk [vmem:[%s236 + $0x28] sm:$0xff] %vm219, %v233
        %243 = vst.msk [vmem:[%s236 + $0x30] sm:$0xff] %vm219, %v234
        %244 = vst.msk [vmem:[%s236 + $0x38] sm:$0xff] %vm219, %v235
        %v245 = vld [vmem:[#allocation2] sm:$0xff]
        %v246 = vld [vmem:[#allocation2 + $0x8] sm:$0xff]
        %v247 = vld [vmem:[#allocation2 + $0x18] sm:$0xff]
        %v248 = vld [vmem:[#allocation2 + $0x20] sm:$0xff]
        %v249 = vld [vmem:[#allocation2 + $0x30] sm:$0xff]
        %v250 = vld [vmem:[#allocation2 + $0x38] sm:$0xff]
        %v251 = vld [vmem:[#allocation2 + $0x48] sm:$0xff]
        %v252 = vld [vmem:[#allocation2 + $0x50] sm:$0xff]
        %261 = vrot.lane.b32.xlu0 %v245, 126
        %v262 = vpop.permute.xlu0 %261
        %263 = vrot.lane.b32.xlu0 %v246, 126
        %v264 = vpop.permute.xlu0 %263
        %265 = vrot.lane.b32.xlu0 %v247, 126
        %v266 = vpop.permute.xlu0 %265
        %267 = vrot.lane.b32.xlu0 %v248, 126
        %v268 = vpop.permute.xlu0 %267
        %269 = vrot.lane.b32.xlu0 %v249, 126
        %v270 = vpop.permute.xlu0 %269
        %271 = vrot.lane.b32.xlu0 %v250, 126
        %v272 = vpop.permute.xlu0 %271
        %273 = vrot.lane.b32.xlu0 %v251, 126
        %v274 = vpop.permute.xlu0 %273
        %275 = vrot.lane.b32.xlu0 %v252, 126
        %v276 = vpop.permute.xlu0 %275
        %s285 = scalar_lea.vmem %s153, 128 [#allocation6]
        %286 = vst.msk [vmem:[%s285] sm:$0xff] %vm219, %v262
        %287 = vst.msk [vmem:[%s285 + $0x8] sm:$0xff] %vm219, %v264
        %288 = vst.msk [vmem:[%s285 + $0x10] sm:$0xff] %vm219, %v266
        %289 = vst.msk [vmem:[%s285 + $0x18] sm:$0xff] %vm219, %v268
        %290 = vst.msk [vmem:[%s285 + $0x20] sm:$0xff] %vm219, %v270
        %291 = vst.msk [vmem:[%s285 + $0x28] sm:$0xff] %vm219, %v272
        %292 = vst.msk [vmem:[%s285 + $0x30] sm:$0xff] %vm219, %v274
        %293 = vst.msk [vmem:[%s285 + $0x38] sm:$0xff] %vm219, %v276
        %v294 = vld [vmem:[#allocation2 + $0x2] sm:$0xff]
        %v295 = vld [vmem:[#allocation2 + $0xa] sm:$0xff]
        %v296 = vld [vmem:[#allocation2 + $0x1a] sm:$0xff]
        %v297 = vld [vmem:[#allocation2 + $0x22] sm:$0xff]
        %v298 = vld [vmem:[#allocation2 + $0x32] sm:$0xff]
        %v299 = vld [vmem:[#allocation2 + $0x3a] sm:$0xff]
        %v300 = vld [vmem:[#allocation2 + $0x4a] sm:$0xff]
        %v301 = vld [vmem:[#allocation2 + $0x52] sm:$0xff]
        %s302 = scalar_lea.vmem %s153, 192 [#allocation6]
        %303 = vst.msk [vmem:[%s302] sm:$0xff] %vm219, %v294
        %304 = vst.msk [vmem:[%s302 + $0x8] sm:$0xff] %vm219, %v295
        %305 = vst.msk [vmem:[%s302 + $0x10] sm:$0xff] %vm219, %v296
        %306 = vst.msk [vmem:[%s302 + $0x18] sm:$0xff] %vm219, %v297
        %307 = vst.msk [vmem:[%s302 + $0x20] sm:$0xff] %vm219, %v298
        %308 = vst.msk [vmem:[%s302 + $0x28] sm:$0xff] %vm219, %v299
        %309 = vst.msk [vmem:[%s302 + $0x30] sm:$0xff] %vm219, %v300
        %310 = vst.msk [vmem:[%s302 + $0x38] sm:$0xff] %vm219, %v301
        %v311 = vld [vmem:[#allocation2 + $0x2] sm:$0xff]
        %v312 = vld [vmem:[#allocation2 + $0xa] sm:$0xff]
        %v313 = vld [vmem:[#allocation2 + $0x1a] sm:$0xff]
        %v314 = vld [vmem:[#allocation2 + $0x22] sm:$0xff]
        %v315 = vld [vmem:[#allocation2 + $0x32] sm:$0xff]
        %v316 = vld [vmem:[#allocation2 + $0x3a] sm:$0xff]
        %v317 = vld [vmem:[#allocation2 + $0x4a] sm:$0xff]
        %v318 = vld [vmem:[#allocation2 + $0x52] sm:$0xff]
        %327 = vrot.lane.b32.xlu0 %v311, 126
        %v328 = vpop.permute.xlu0 %327
        %329 = vrot.lane.b32.xlu0 %v312, 126
        %v330 = vpop.permute.xlu0 %329
        %331 = vrot.lane.b32.xlu0 %v313, 126
        %v332 = vpop.permute.xlu0 %331
        %333 = vrot.lane.b32.xlu0 %v314, 126
        %v334 = vpop.permute.xlu0 %333
        %335 = vrot.lane.b32.xlu0 %v315, 126
        %v336 = vpop.permute.xlu0 %335
        %337 = vrot.lane.b32.xlu0 %v316, 126
        %v338 = vpop.permute.xlu0 %337
        %339 = vrot.lane.b32.xlu0 %v317, 126
        %v340 = vpop.permute.xlu0 %339
        %341 = vrot.lane.b32.xlu0 %v318, 126
        %v342 = vpop.permute.xlu0 %341
        %s351 = scalar_lea.vmem %s153, 256 [#allocation6]
        %352 = vst.msk [vmem:[%s351] sm:$0xff] %vm219, %v328
        %353 = vst.msk [vmem:[%s351 + $0x8] sm:$0xff] %vm219, %v330
        %354 = vst.msk [vmem:[%s351 + $0x10] sm:$0xff] %vm219, %v332
        %355 = vst.msk [vmem:[%s351 + $0x18] sm:$0xff] %vm219, %v334
        %356 = vst.msk [vmem:[%s351 + $0x20] sm:$0xff] %vm219, %v336
        %357 = vst.msk [vmem:[%s351 + $0x28] sm:$0xff] %vm219, %v338
        %358 = vst.msk [vmem:[%s351 + $0x30] sm:$0xff] %vm219, %v340
        %359 = vst.msk [vmem:[%s351 + $0x38] sm:$0xff] %vm219, %v342
        %s360 = sand.u32 %s68, 1
        %s361 = scalar_lea.sflag [#allocation5], %s360
        %s362 = sand.u32 %s68, 1
        %s363 = smul.addr %s362, 320
        %s364 = scalar_lea.vmem [#allocation6], %s363
        // Predicated region
        $region29: #{tpu_custom_call.1} parent=23 // pred_check
          %p365 = pneg %p78
        $region30: #{tpu_custom_call.1} parent=23 // pred_check_branch
          %367 = sbr.rel (%p365) target = $region32
        $region31: #{tpu_custom_call.1} parent=23 // pred_region
          %s368 = smul.u32 4, %s23
          %s370 = ssub.s32 5120, 5120
          %371 = vsyncadd %s361, %s370
          %s372 = smul.addr %s368, 2
          %s373 = smul.addr %s22, 40
          %s374 = sadd.s32 %s372, %s373
          %s375 = smul.addr %s374, 128
          %s376 = scalar_lea.hbm %s1, %s375
          %s377 = sshll.u32 %s364, 4
          %s378 = int_to_ptr.vmem [resolvable:$true] %s377
          %383 = dma.vmem_to_hbm [thread:$0]  %s378, 5120, %s376, %s361, 128, 128, 8
        $region32: #{tpu_custom_call.1} parent=23 // pred_fallthru
          _
      $region24: #{tpu_custom_call.1} parent=5 // pred_fallthru
        _
      %p384 = scmp.le.s32.totalorder 2, %s13
      // Predicated region
      $region33: #{tpu_custom_call.1} parent=5 // pred_check
        %p385 = pneg %p384
      $region34: #{tpu_custom_call.1} parent=5 // pred_check_branch
        %387 = sbr.rel (%p385) target = $region36
      $region35: #{tpu_custom_call.1} parent=5 // pred_region
        %s388 = ssub.s32 %s13, 2
        // Predicated region
        $region37: #{tpu_custom_call.1} parent=35 // pred_check
          %p389 = pneg %p84
        $region38: #{tpu_custom_call.1} parent=35 // pred_check_branch
          %391 = sbr.rel (%p389) target = $region40
        $region39: #{tpu_custom_call.1} parent=35 // pred_region
          %s392 = sand.u32 %s69, 1
          %s393 = scalar_lea.sflag [#allocation5], %s392
          %s394 = sand.u32 %s69, 1
          %s395 = smul.addr %s394, 320
          %s396 = scalar_lea.vmem [#allocation6], %s395
          %397 = dma.done %s393, 5120
        $region40: #{tpu_custom_call.1} parent=35 // pred_fallthru
          _
      $region36: #{tpu_custom_call.1} parent=5 // pred_fallthru
        _
    $region6: #{tpu_custom_call.1} parent=1 // loop_footer
      %s17 = sadd.s32 1, %s13
    $region7: #{tpu_custom_call.1} parent=1 // loop_footer_branch
      %12 = sbr.rel target = $region3
    $region8: #{tpu_custom_call.1} parent=1 // loop_exit
      _
    %398 = vsyncpa [#allocation4], 1
    %s399 = scalar_lea.sflag [#allocation4], 1
    %400 = vsyncpa %s399, 1
    %401 = vsyncpa [#allocation5], 1
    %s402 = scalar_lea.sflag [#allocation5], 1
    %403 = vsyncpa %s402, 1

</llo_original>
